<compile_context>
chip_gen: v7x
topology: tpu7x:2x2x1
jax: 0.10.0
libtpu: 0.0.40
codegen_flags: <defaults>
</compile_context>

<pallas_src>
import math

import jax
import jax.numpy as jnp
from jax import lax
from jax.experimental import pallas as pl
from jax.experimental.pallas import tpu as pltpu


def _attention_body(q_ref, k_ref, v_ref, out_ref, attn_ref, mask_ref):
    d = q_ref.shape[-1]
    # Fold the 1/sqrt(d) scale into Q (Nq*d elems, not Nq*Nk).
    q = q_ref[...] * (1.0 / math.sqrt(d))
    # Q @ K^T without an explicit transpose: contract last dim of Q with last
    # dim of K.  Operands stay in their native dtype; MXU accumulates in f32.
    scores = lax.dot_general(
        q,
        k_ref[...],
        dimension_numbers=(((1,), (1,)), ((), ())),
        preferred_element_type=jnp.float32,
    )
    if mask_ref is not None:
        scores = jnp.where(mask_ref[...] == 0, jnp.float32(-1000000000.0), scores)
    # Numerically stable softmax over the key axis.
    m = jnp.max(scores, axis=-1, keepdims=True)
    e = jnp.exp(scores - m)
    s = jnp.sum(e, axis=-1, keepdims=True)
    attn = e * pl.reciprocal(s, approx=True)
    attn_ref[...] = attn.astype(attn_ref.dtype)
    out = jnp.dot(
        attn.astype(v_ref.dtype), v_ref[...], preferred_element_type=jnp.float32
    )
    out_ref[...] = out.astype(out_ref.dtype)


def _self_attention_kernel(q_ref, k_ref, v_ref, out_ref, attn_ref):
    _attention_body(q_ref, k_ref, v_ref, out_ref, attn_ref, None)


def _self_attention_masked_kernel(q_ref, k_ref, v_ref, mask_ref, out_ref, attn_ref):
    _attention_body(q_ref, k_ref, v_ref, out_ref, attn_ref, mask_ref)


@jax.jit
def self_attention(queries, keys, values, mask=None):
    """queries (Nq, d), keys (Nk, d), values (Nk, dv); optional mask (Nq, Nk)."""
    nq, d = queries.shape
    nk, _ = keys.shape
    dv = values.shape[-1]

    # Query-tile size: one tile for small inputs, otherwise 512 rows -- big
    # enough to amortize the ~0.35 us/step grid overhead, small enough that
    # the per-step footprint (Q/mask/out/attn tiles + resident K/V) stays well
    # inside v7x's 64 MiB VMEM for typical Nk, d.
    block_q = nq if nq <= 512 else 512
    grid = (pl.cdiv(nq, block_q),)

    q_spec = pl.BlockSpec((block_q, d), lambda i: (i, 0))
    k_spec = pl.BlockSpec((nk, d), lambda i: (0, 0))     # resident across steps
    v_spec = pl.BlockSpec((nk, dv), lambda i: (0, 0))    # resident across steps
    out_spec = pl.BlockSpec((block_q, dv), lambda i: (i, 0))
    attn_spec = pl.BlockSpec((block_q, nk), lambda i: (i, 0))

    out_shapes = (
        jax.ShapeDtypeStruct((nq, dv), queries.dtype),   # output
        jax.ShapeDtypeStruct((nq, nk), queries.dtype),   # attention weights
    )

    compiler_params = pltpu.CompilerParams(
        dimension_semantics=("parallel",),               # both v7x TCs take Q tiles
        vmem_limit_bytes=48 * 1024 * 1024,               # raise from default; < 64 MiB (v7x)
    )

    if mask is not None:
        mask_i8 = (mask != 0).astype(jnp.int8)           # 4x less HBM than int32
        mask_spec = pl.BlockSpec((block_q, nk), lambda i: (i, 0))
        return pl.pallas_call(
            _self_attention_masked_kernel,
            grid=grid,
            in_specs=[q_spec, k_spec, v_spec, mask_spec],
            out_specs=(out_spec, attn_spec),
            out_shape=out_shapes,
            compiler_params=compiler_params,
        )(queries, keys, values, mask_i8)

    return pl.pallas_call(
        _self_attention_kernel,
        grid=grid,
        in_specs=[q_spec, k_spec, v_spec],
        out_specs=(out_spec, attn_spec),
        out_shape=out_shapes,
        compiler_params=compiler_params,
    )(queries, keys, values)


def _reference(queries, keys, values, mask=None):
    d = queries.shape[-1]
    scores = jnp.matmul(queries, keys.T) / math.sqrt(d)
    if mask is not None:
        scores = jnp.where(mask == 0, -1000000000.0, scores)
    attn = jax.nn.softmax(scores, axis=-1)
    out = jnp.matmul(attn, values)
    return out, attn


if __name__ == "__main__":
    key = jax.random.PRNGKey(0)
    k_q, k_k, k_v, k_m = jax.random.split(key, 4)

    # Small shapes consistent with the forward: 2D Q/K/V, seq=8/16, hidden=32.
    nq, nk, d, dv = 8, 16, 32, 32
    queries = jax.random.normal(k_q, (nq, d), dtype=jnp.float32)
    keys = jax.random.normal(k_k, (nk, d), dtype=jnp.float32)
    values = jax.random.normal(k_v, (nk, dv), dtype=jnp.float32)
    mask = (jax.random.uniform(k_m, (nq, nk)) > 0.3).astype(jnp.int32)

    # No-mask path.
    out, attn = self_attention(queries, keys, values)
    out, attn = jax.block_until_ready((out, attn))
    ref_out, ref_attn = _reference(queries, keys, values)
    # Tolerances loosened slightly for the EUP approximate reciprocal.
    assert jnp.allclose(out, ref_out, atol=2e-3, rtol=2e-3)
    assert jnp.allclose(attn, ref_attn, atol=1e-3, rtol=1e-3)

    # Masked path.
    out_m, attn_m = self_attention(queries, keys, values, mask)
    out_m, attn_m = jax.block_until_ready((out_m, attn_m))
    ref_out_m, ref_attn_m = _reference(queries, keys, values, mask)
    assert jnp.allclose(out_m, ref_out_m, atol=2e-3, rtol=2e-3)
    assert jnp.allclose(attn_m, ref_attn_m, atol=1e-3, rtol=1e-3)

    print("KERNEL_OK")
</pallas_src>

<mosaic_0001>
module attributes {stable_mosaic.version = 11 : i64} {
  func.func @_self_attention_kernel(%arg0: i32, %arg1: memref<8x32xf32, #tpu.memory_space<vmem>>, %arg2: memref<16x32xf32, #tpu.memory_space<vmem>>, %arg3: memref<16x32xf32, #tpu.memory_space<vmem>>, %arg4: memref<8x32xf32, #tpu.memory_space<vmem>>, %arg5: memref<8x16xf32, #tpu.memory_space<vmem>>) attributes {dimension_semantics = [#tpu.dimension_semantics<parallel>], iteration_bounds = array<i64: 1>, scalar_prefetch = 0 : i64, scratch_operands = 0 : i64, tpu.core_type = #tpu.core_type<tc>, window_params = [{transform_indices = @transform_0, window_bounds = array<i64: 8, 32>}, {pipeline_mode = #tpu.pipeline_mode<synchronous>, transform_indices = @transform_1, window_bounds = array<i64: 16, 32>}, {pipeline_mode = #tpu.pipeline_mode<synchronous>, transform_indices = @transform_2, window_bounds = array<i64: 16, 32>}, {transform_indices = @transform_3, window_bounds = array<i64: 8, 32>}, {transform_indices = @transform_4, window_bounds = array<i64: 8, 16>}]} {
    %c0 = arith.constant 0 : index
    %c0_0 = arith.constant 0 : index
    %0 = vector.load %arg1[%c0, %c0_0] : memref<8x32xf32, #tpu.memory_space<vmem>>, vector<8x32xf32>
    %cst = arith.constant 0.176776692 : f32
    %1 = vector.broadcast %cst : f32 to vector<8x32xf32>
    %2 = arith.mulf %0, %1 : vector<8x32xf32>
    %c0_1 = arith.constant 0 : index
    %c0_2 = arith.constant 0 : index
    %3 = vector.load %arg2[%c0_1, %c0_2] : memref<16x32xf32, #tpu.memory_space<vmem>>, vector<16x32xf32>
    %cst_3 = arith.constant dense<0.000000e+00> : vector<8x16xf32>
    %4 = tpu.matmul %2, %3, %cst_3 {dimension_numbers = #tpu.dot_dimension_numbers<[1], [1], [0], [0], [0, 0, 1, 0], [], []>} : vector<8x32xf32>, vector<16x32xf32>, vector<8x16xf32> -> vector<8x16xf32>
    %cst_4 = arith.constant dense<0xFF800000> : vector<8xf32>
    %5 = vector.multi_reduction <maximumf>, %4, %cst_4 [1] : vector<8x16xf32> to vector<8xf32>
    %6 = vector.shape_cast %5 : vector<8xf32> to vector<8x1xf32>
    %7 = vector.broadcast %6 : vector<8x1xf32> to vector<8x16xf32>
    %8 = arith.subf %4, %7 : vector<8x16xf32>
    %9 = math.exp %8 : vector<8x16xf32>
    %cst_5 = arith.constant dense<0.000000e+00> : vector<8xf32>
    %10 = vector.multi_reduction <add>, %9, %cst_5 [1] : vector<8x16xf32> to vector<8xf32>
    %11 = vector.shape_cast %10 : vector<8xf32> to vector<8x1xf32>
    %12 = tpu.reciprocal %11 {approx = true} : vector<8x1xf32> -> vector<8x1xf32>
    %13 = vector.broadcast %12 : vector<8x1xf32> to vector<8x16xf32>
    %14 = arith.mulf %9, %13 : vector<8x16xf32>
    %c0_6 = arith.constant 0 : index
    %c0_7 = arith.constant 0 : index
    %15 = vector.load %arg5[%c0_6, %c0_7] : memref<8x16xf32, #tpu.memory_space<vmem>>, vector<8x16xf32>
    tpu.vector_store %arg5[%c0_6, %c0_7], %14 {strides = array<i32>} : memref<8x16xf32, #tpu.memory_space<vmem>>, vector<8x16xf32>,
    %c0_8 = arith.constant 0 : index
    %c0_9 = arith.constant 0 : index
    %16 = vector.load %arg3[%c0_8, %c0_9] : memref<16x32xf32, #tpu.memory_space<vmem>>, vector<16x32xf32>
    %cst_10 = arith.constant dense<0.000000e+00> : vector<8x32xf32>
    %17 = tpu.matmul %14, %16, %cst_10 {dimension_numbers = #tpu.dot_dimension_numbers<[1], [0], [0], [1], [0, 0, 1, 1], [], []>} : vector<8x16xf32>, vector<16x32xf32>, vector<8x32xf32> -> vector<8x32xf32>
    %c0_11 = arith.constant 0 : index
    %c0_12 = arith.constant 0 : index
    %18 = vector.load %arg4[%c0_11, %c0_12] : memref<8x32xf32, #tpu.memory_space<vmem>>, vector<8x32xf32>
    tpu.vector_store %arg4[%c0_11, %c0_12], %17 {strides = array<i32>} : memref<8x32xf32, #tpu.memory_space<vmem>>, vector<8x32xf32>,
    return
  }
  func.func @transform_0(%arg0: i32) -> (i32, i32) {
    %c0_i32 = arith.constant 0 : i32
    %c0_i32_0 = arith.constant 0 : i32
    return %arg0, %c0_i32 : i32, i32
  }
  func.func @transform_1(%arg0: i32) -> (i32, i32) {
    %c0_i32 = arith.constant 0 : i32
    %c0_i32_0 = arith.constant 0 : i32
    %c0_i32_1 = arith.constant 0 : i32
    return %c0_i32, %c0_i32_0 : i32, i32
  }
  func.func @transform_2(%arg0: i32) -> (i32, i32) {
    %c0_i32 = arith.constant 0 : i32
    %c0_i32_0 = arith.constant 0 : i32
    %c0_i32_1 = arith.constant 0 : i32
    return %c0_i32, %c0_i32_0 : i32, i32
  }
  func.func @transform_3(%arg0: i32) -> (i32, i32) {
    %c0_i32 = arith.constant 0 : i32
    %c0_i32_0 = arith.constant 0 : i32
    return %arg0, %c0_i32 : i32, i32
  }
  func.func @transform_4(%arg0: i32) -> (i32, i32) {
    %c0_i32 = arith.constant 0 : i32
    %c0_i32_0 = arith.constant 0 : i32
    return %arg0, %c0_i32 : i32, i32
  }
}

</mosaic_0001>

<llo_original>
// kernel: self_attention.1
$region0: #{self_attention.1}
  #allocation0 [shape = 'u32[]', space=smem, size = 0x4, offset = 0x4, fixed_abs, tag = 'smem constant byte address 0x4 - core index']
  #allocation1 [shape = 'u32[144,128]{1,0:T(1,128)}', space=vmem, size = 0x12000, scoped, tag = 'internal scratch']
  %s0 = inlined_call_operand.hbm [shape: f32[8,32], index: 0, kind: input, shape index: {}]
  %s1 = inlined_call_operand.hbm [shape: f32[16,32], index: 1, kind: input, shape index: {}]
  %s2 = inlined_call_operand.hbm [shape: f32[16,32], index: 2, kind: input, shape index: {}]
  %s3 = inlined_call_operand.hbm [shape: f32[8,32], index: 3, kind: output, shape index: {0}]
  %s4 = inlined_call_operand.hbm [shape: f32[8,16], index: 4, kind: output, shape index: {1}]
  %5 = xla_tuple %s3, %s4
  %s6 = sld [smem:[#allocation0]]
  $region42: #{self_attention.1} parent=0
    _
  %s8 = ssub.s32 1, %s6
  %s9 = scalar_select 0, %s8, %s6
  $region1: #{self_attention.1} parent=0
    #allocation2 [shape = 'u8[4096]{0}', space=vmem, size = 0x1000, scoped, tag = 'input window, operand 0, single buffered']
    #allocation3 [shape = 's32[1]{0}', space=sflag, size = 0x4, scoped, tag = 'scoped memory for self_attention.1']
    #allocation4 [shape = 's32[1]{0}', space=sflag, size = 0x4, scoped, tag = 'scoped memory for self_attention.1']
    #allocation5 [shape = 'u8[8192]{0}', space=vmem, size = 0x2000, scoped, tag = 'input window, operand 1, single buffered']
    #allocation6 [shape = 's32[1]{0}', space=sflag, size = 0x4, scoped, tag = 'scoped memory for self_attention.1']
    #allocation7 [shape = 'u8[8192]{0}', space=vmem, size = 0x2000, scoped, tag = 'input window, operand 2, single buffered']
    #allocation8 [shape = 'u8[4096]{0}', space=vmem, size = 0x1000, scoped, tag = 'output window, operand 0, single buffered']
    #allocation9 [shape = 'u8[4096]{0}', space=vmem, size = 0x1000, scoped, tag = 'output window, operand 1, single buffered']
    #allocation10 [shape = 's32[1]{0}', space=sflag, size = 0x4, scoped, tag = 'scoped memory for self_attention.1']
    %10 = vsyncpa [#allocation3], 0
    %11 = vsyncpa [#allocation6], 0
    %12 = vsyncpa [#allocation4], 0
    %13 = vsyncpa [#allocation10], 0
    // Predicated region
    $region2: #{self_attention.1} parent=1 // pred_check
      _
    $region3: #{self_attention.1} parent=1 // pred_check_branch
      %15 = sbr.rel (0) target = $region5
    $region4: #{self_attention.1} parent=1 // pred_region
      %s17 = ssub.s32 128, 128
      %18 = vsyncadd [#allocation3], %s17
      %s20 = sshll.u32 [#allocation2], 4
      %s21 = int_to_ptr.vmem [resolvable:$true] %s20
      %23 = dma.hbm_to_vmem [thread:$0]  %s0, 128, %s21, [#allocation3]
    $region5: #{self_attention.1} parent=1 // pred_fallthru
      _
    // Predicated region
    $region6: #{self_attention.1} parent=1 // pred_check
      _
    $region7: #{self_attention.1} parent=1 // pred_check_branch
      %25 = sbr.rel (0) target = $region9
    $region8: #{self_attention.1} parent=1 // pred_region
      %s27 = ssub.s32 256, 256
      %28 = vsyncadd [#allocation6], %s27
      %s29 = sshll.u32 [#allocation5], 4
      %s30 = int_to_ptr.vmem [resolvable:$true] %s29
      %35 = dma.hbm_to_vmem [thread:$0]  %s1, 256, %s30, [#allocation6], 128, 128, 8
    $region9: #{self_attention.1} parent=1 // pred_fallthru
      _
    // Predicated region
    $region10: #{self_attention.1} parent=1 // pred_check
      _
    $region11: #{self_attention.1} parent=1 // pred_check_branch
      %37 = sbr.rel (0) target = $region13
    $region12: #{self_attention.1} parent=1 // pred_region
      %s39 = ssub.s32 256, 256
      %40 = vsyncadd [#allocation6], %s39
      %s41 = sshll.u32 [#allocation7], 4
      %s42 = int_to_ptr.vmem [resolvable:$true] %s41
      %47 = dma.hbm_to_vmem [thread:$0]  %s2, 256, %s42, [#allocation6], 128, 128, 8
    $region13: #{self_attention.1} parent=1 // pred_fallthru
      _
    // Predicated region
    $region14: #{self_attention.1} parent=1 // pred_check
      _
    $region15: #{self_attention.1} parent=1 // pred_check_branch
      %49 = sbr.rel (0) target = $region17
    $region16: #{self_attention.1} parent=1 // pred_region
      %50 = dma.done [#allocation3], 128
    $region17: #{self_attention.1} parent=1 // pred_fallthru
      _
    // Predicated region
    $region18: #{self_attention.1} parent=1 // pred_check
      _
    $region19: #{self_attention.1} parent=1 // pred_check_branch
      %52 = sbr.rel (0) target = $region21
    $region20: #{self_attention.1} parent=1 // pred_region
      %53 = dma.done [#allocation6], 256
    $region21: #{self_attention.1} parent=1 // pred_fallthru
      _
    // Predicated region
    $region22: #{self_attention.1} parent=1 // pred_check
      _
    $region23: #{self_attention.1} parent=1 // pred_check_branch
      %55 = sbr.rel (0) target = $region25
    $region24: #{self_attention.1} parent=1 // pred_region
      %56 = dma.done [#allocation6], 256
    $region25: #{self_attention.1} parent=1 // pred_fallthru
      _
    %v57 = vld [vmem:[#allocation2] sm:$0xff]
    %v58 = vmul.f32 %v57, 0.17677669
    %v59 = vld [vmem:[#allocation5] sm:$0xff]
    %v60 = vld [vmem:[#allocation5 + $0x8] sm:$0xff]
    %vm61 = vcmask 261120
    %v63 = vsel %vm61, %v58, 0
    %v66 = vsel %vm61, %v59, 0
    %v69 = vsel %vm61, %v60, 0
    %71 = vmatprep.subr.mxu0 0.0
    %72 = vmatpush1.xpose.msra.mxu0 %v66
    %73 = vmatprep.subr.mxu0 0.0
    %74 = vmatpush1.xpose.msra.mxu0 %v69
    %75 = vmatprep.subr.mxu0 0.0
    %76 = vmatpush1.xpose.msra.mxu0 0.0
    %77 = vmatprep.subr.mxu0 0.0
    %78 = vmatpush1.xpose.msra.mxu0 0.0
    %79 = vmatprep.subr.mxu0 0.0
    %80 = vmatpush1.xpose.msra.mxu0 0.0
    %81 = vmatprep.subr.mxu0 0.0
    %82 = vmatpush1.xpose.msra.mxu0 0.0
    %83 = vmatprep.subr.mxu0 0.0
    %84 = vmatpush1.xpose.msra.mxu0 0.0
    %85 = vmatprep.subr.mxu0 0.0
    %86 = vmatpush1.xpose.msra.mxu0 0.0
    %87 = vmatprep.subr.mxu0 0.0
    %88 = vmatpush1.xpose.msra.mxu0 0.0
    %89 = vmatprep.subr.mxu0 0.0
    %90 = vmatpush1.xpose.msra.mxu0 0.0
    %91 = vmatprep.subr.mxu0 0.0
    %92 = vmatpush1.xpose.msra.mxu0 0.0
    %93 = vmatprep.subr.mxu0 0.0
    %94 = vmatpush1.xpose.msra.mxu0 0.0
    %95 = vmatprep.subr.mxu0 0.0
    %96 = vmatpush1.xpose.msra.mxu0 0.0
    %97 = vmatprep.subr.mxu0 0.0
    %98 = vmatpush1.xpose.msra.mxu0 0.0
    %99 = vmatprep.subr.mxu0 0.0
    %100 = vmatpush1.xpose.msra.mxu0 0.0
    %101 = vmatprep.subr.mxu0 0.0
    %102 = vmatpush1.xpose.msra.mxu0 0.0
    %103 = vmatprep.subr.mxu0 0.0
    %104 = vmatpush1.xpose.msra.mxu0 0.0
    %105 = vmatprep.subr.mxu0 0.0
    %106 = vmatpush1.xpose.msra.mxu0 0.0
    %107 = vmatprep.subr.mxu0 0.0
    %108 = vmatpush1.xpose.msra.mxu0 0.0
    %109 = vmatprep.subr.mxu0 0.0
    %110 = vmatpush1.xpose.msra.mxu0 0.0
    %111 = vmatprep.subr.mxu0 0.0
    %112 = vmatpush1.xpose.msra.mxu0 0.0
    %113 = vmatprep.subr.mxu0 0.0
    %114 = vmatpush1.xpose.msra.mxu0 0.0
    %115 = vmatprep.subr.mxu0 0.0
    %116 = vmatpush1.xpose.msra.mxu0 0.0
    %117 = vmatprep.subr.mxu0 0.0
    %118 = vmatpush1.xpose.msra.mxu0 0.0
    %119 = vmatprep.subr.mxu0 0.0
    %120 = vmatpush1.xpose.msra.mxu0 0.0
    %121 = vmatprep.subr.mxu0 0.0
    %122 = vmatpush1.xpose.msra.mxu0 0.0
    %123 = vmatprep.subr.mxu0 0.0
    %124 = vmatpush1.xpose.msra.mxu0 0.0
    %125 = vmatprep.subr.mxu0 0.0
    %126 = vmatpush1.xpose.msra.mxu0 0.0
    %127 = vmatprep.subr.mxu0 0.0
    %128 = vmatpush1.xpose.msra.mxu0 0.0
    %129 = vmatprep.subr.mxu0 0.0
    %130 = vmatpush1.xpose.msra.mxu0 0.0
    %131 = vmatprep.subr.mxu0 0.0
    %132 = vmatpush1.xpose.msra.mxu0 0.0
    %133 = vmatprep.subr.mxu0 0.0
    %134 = vmatpush1.xpose.msra.mxu0 0.0
    %135 = vmatprep.mubr.f32.mxu0 0.0
    %136 = vmatmul.mubr.f32.gmra.mrb[0].mxu0 %v63
    %v137 = vpop.f32.mrb[0].mxu0
    %v138 = vadd.f32 0.0, %v137
    %v139 = vpop.f32.mrb[0].mxu0
    %140 = vdwg.mxu0
    %vm141 = vcmask 130048
    %v142 = vsel %vm141, %v138, -inf
    %143 = vmax.xlane.f32.xlu0 %v142
    %v144 = vpop.xlane.xlu0 %143
    %v145 = vsub.f32 %v138, %v144
    %v146 = vmul.f32 %v145, 1.442695
    %v147 = vpow.pop %v146
    %v148 = vsel %vm141, %v147, 0.0
    %149 = vadd.xlane.f32.xlu0 %v148
    %v150 = vpop.xlane.xlu0 %149
    %v151 = vrcp.pop %v150
    %v152 = vmul.f32 %v147, %v151
    %153 = vst.msk [vmem:[#allocation9] sm:$0xff] %vm141, %v152
    %v154 = vld [vmem:[#allocation7] sm:$0xff]
    %v155 = vld [vmem:[#allocation7 + $0x8] sm:$0xff]
    %v157 = vsel %vm141, %v152, 0
    %159 = vmatprep.subr.mxu0 0.0
    %160 = vmatpush1.msra.mxu0 %v154
    %161 = vmatprep.subr.mxu0 0.0
    %162 = vmatpush1.msra.mxu0 %v155
    %163 = vmatprep.subr.mxu0 0.0
    %164 = vmatpush1.msra.mxu0 0.0
    %165 = vmatprep.subr.mxu0 0.0
    %166 = vmatpush1.msra.mxu0 0.0
    %167 = vmatprep.subr.mxu0 0.0
    %168 = vmatpush1.msra.mxu0 0.0
    %169 = vmatprep.subr.mxu0 0.0
    %170 = vmatpush1.msra.mxu0 0.0
    %171 = vmatprep.subr.mxu0 0.0
    %172 = vmatpush1.msra.mxu0 0.0
    %173 = vmatprep.subr.mxu0 0.0
    %174 = vmatpush1.msra.mxu0 0.0
    %175 = vmatprep.subr.mxu0 0.0
    %176 = vmatpush1.msra.mxu0 0.0
    %177 = vmatprep.subr.mxu0 0.0
    %178 = vmatpush1.msra.mxu0 0.0
    %179 = vmatprep.subr.mxu0 0.0
    %180 = vmatpush1.msra.mxu0 0.0
    %181 = vmatprep.subr.mxu0 0.0
    %182 = vmatpush1.msra.mxu0 0.0
    %183 = vmatprep.subr.mxu0 0.0
    %184 = vmatpush1.msra.mxu0 0.0
    %185 = vmatprep.subr.mxu0 0.0
    %186 = vmatpush1.msra.mxu0 0.0
    %187 = vmatprep.subr.mxu0 0.0
    %188 = vmatpush1.msra.mxu0 0.0
    %189 = vmatprep.subr.mxu0 0.0
    %190 = vmatpush1.msra.mxu0 0.0
    %191 = vmatprep.subr.mxu0 0.0
    %192 = vmatpush1.msra.mxu0 0.0
    %193 = vmatprep.subr.mxu0 0.0
    %194 = vmatpush1.msra.mxu0 0.0
    %195 = vmatprep.subr.mxu0 0.0
    %196 = vmatpush1.msra.mxu0 0.0
    %197 = vmatprep.subr.mxu0 0.0
    %198 = vmatpush1.msra.mxu0 0.0
    %199 = vmatprep.subr.mxu0 0.0
    %200 = vmatpush1.msra.mxu0 0.0
    %201 = vmatprep.subr.mxu0 0.0
    %202 = vmatpush1.msra.mxu0 0.0
    %203 = vmatprep.subr.mxu0 0.0
    %204 = vmatpush1.msra.mxu0 0.0
    %205 = vmatprep.subr.mxu0 0.0
    %206 = vmatpush1.msra.mxu0 0.0
    %207 = vmatprep.subr.mxu0 0.0
    %208 = vmatpush1.msra.mxu0 0.0
    %209 = vmatprep.subr.mxu0 0.0
    %210 = vmatpush1.msra.mxu0 0.0
    %211 = vmatprep.subr.mxu0 0.0
    %212 = vmatpush1.msra.mxu0 0.0
    %213 = vmatprep.subr.mxu0 0.0
    %214 = vmatpush1.msra.mxu0 0.0
    %215 = vmatprep.subr.mxu0 0.0
    %216 = vmatpush1.msra.mxu0 0.0
    %217 = vmatprep.subr.mxu0 0.0
    %218 = vmatpush1.msra.mxu0 0.0
    %219 = vmatprep.subr.mxu0 0.0
    %220 = vmatpush1.msra.mxu0 0.0
    %221 = vmatprep.subr.mxu0 0.0
    %222 = vmatpush1.msra.mxu0 0.0
    %223 = vmatprep.mubr.f32.mxu0 0.0
    %224 = vmatmul.mubr.f32.gmra.mrb[0].mxu0 %v157
    %v225 = vpop.f32.mrb[0].mxu0
    %v226 = vadd.f32 0.0, %v225
    %v227 = vpop.f32.mrb[0].mxu0
    %228 = vdwg.mxu0
    %229 = vst.msk [vmem:[#allocation8] sm:$0xff] %vm61, %v226
    // Predicated region
    $region26: #{self_attention.1} parent=1 // pred_check
      _
    $region27: #{self_attention.1} parent=1 // pred_check_branch
      %231 = sbr.rel (0) target = $region29
    $region28: #{self_attention.1} parent=1 // pred_region
      %s233 = ssub.s32 128, 128
      %234 = vsyncadd [#allocation4], %s233
      %s236 = sshll.u32 [#allocation8], 4
      %s237 = int_to_ptr.vmem [resolvable:$true] %s236
      %239 = dma.vmem_to_hbm [thread:$0]  %s237, 128, %s3, [#allocation4]
    $region29: #{self_attention.1} parent=1 // pred_fallthru
      _
    // Predicated region
    $region30: #{self_attention.1} parent=1 // pred_check
      _
    $region31: #{self_attention.1} parent=1 // pred_check_branch
      %241 = sbr.rel (0) target = $region33
    $region32: #{self_attention.1} parent=1 // pred_region
      %s243 = ssub.s32 128, 128
      %244 = vsyncadd [#allocation10], %s243
      %s246 = sshll.u32 [#allocation9], 4
      %s247 = int_to_ptr.vmem [resolvable:$true] %s246
      %249 = dma.vmem_to_hbm [thread:$0]  %s247, 128, %s4, [#allocation10]
    $region33: #{self_attention.1} parent=1 // pred_fallthru
      _
    // Predicated region
    $region34: #{self_attention.1} parent=1 // pred_check
      _
    $region35: #{self_attention.1} parent=1 // pred_check_branch
      %251 = sbr.rel (0) target = $region37
    $region36: #{self_attention.1} parent=1 // pred_region
      %252 = dma.done [#allocation4], 128
    $region37: #{self_attention.1} parent=1 // pred_fallthru
      _
    // Predicated region
    $region38: #{self_attention.1} parent=1 // pred_check
      _
    $region39: #{self_attention.1} parent=1 // pred_check_branch
      %254 = sbr.rel (0) target = $region41
    $region40: #{self_attention.1} parent=1 // pred_region
      %255 = dma.done [#allocation10], 128
    $region41: #{self_attention.1} parent=1 // pred_fallthru
      _
    %256 = vsyncpa [#allocation3], 1
    %257 = vsyncpa [#allocation6], 1
    %258 = vsyncpa [#allocation4], 1
    %259 = vsyncpa [#allocation10], 1

</llo_original>
